<compile_context>
chip_gen: v7x
topology: tpu7x:2x2x1
jax: 0.10.0
libtpu: 0.0.40
codegen_flags: <defaults>
</compile_context>

<pallas_src>
import math

import jax
import jax.numpy as jnp
from jax import lax
from jax.experimental import pallas as pl
from jax.experimental.pallas import tpu as pltpu


def _make_count_kernel(rows: int, block_rows: int, lane: int, mask_tail: bool):
    """Streaming compare-and-count kernel (static shape params baked in)."""

    def kernel(y_ref, yhat_ref, count_ref, acc_ref):
        i = pl.program_id(0)

        @pl.when(i == 0)
        def _():
            acc_ref[...] = jnp.zeros_like(acc_ref)

        # Exact elementwise equality (pure VPU compare on the full tile).
        match = (yhat_ref[...] == y_ref[...]).astype(jnp.int32)

        if mask_tail:
            # Only the last block can overhang `rows`; the predicate is
            # trivially all-True for earlier blocks, so no pl.when needed.
            # This also zeroes any garbage in the partial-edge DMA region.
            row = lax.broadcasted_iota(jnp.int32, (block_rows, lane), 0)
            match = jnp.where(i * block_rows + row < rows, match, 0)

        # Fold sublanes into the small per-lane accumulator: VALU tree-add plus
        # a single 8-sublane XLU fold, and one narrow store per grid step.
        acc_ref[...] += jnp.sum(match, axis=0, keepdims=True)

        @pl.when(i == pl.num_programs(0) - 1)
        def _():
            # Single expensive cross-lane reduce, done once at the very end.
            count_ref[0, 0] = jnp.sum(acc_ref[...])

    return kernel


def map_loss(y: jax.Array, yhat: jax.Array) -> jax.Array:
    """Pallas equivalent of Map.forward(y, yhat). Returns a scalar float32.

    NOTE: per the reference module, the match count is divided by y.shape[0]
    (the leading/batch dim), not the total element count.
    """
    assert y.shape == yhat.shape
    batch = y.shape[0]
    n = math.prod(y.shape)

    # Compare in a common native dtype (no f32 upcast: narrow dtypes keep this
    # purely-streaming kernel at half / quarter the HBM traffic).
    cdt = jnp.result_type(y.dtype, yhat.dtype)
    y_flat = jnp.ravel(y).astype(cdt)
    yhat_flat = jnp.ravel(yhat).astype(cdt)
    itemsize = jnp.dtype(cdt).itemsize
    # Sublane granularity of the native tile: 8 (4B), 16 (2B), 32 (1B dtypes).
    sub = 8 * max(1, 4 // itemsize)

    # Lane-dense layout: widest 128-multiple that divides n, so the 2-D view is
    # a free reshape (no copy); otherwise fall back to 128 and count the <lane
    # ragged tail in plain JAX.
    lane = 128
    for cand in (1024, 512, 256):
        if n % cand == 0:
            lane = cand
            break
    rows = n // lane
    n_main = rows * lane
    tail = n - n_main

    # Ragged tail (< lane elements): tiny plain-JAX count outside the kernel.
    tail_count = jnp.zeros((), jnp.int32)
    if tail:
        tail_count = jnp.sum(
            (y_flat[n_main:] == yhat_flat[n_main:]).astype(jnp.int32))

    if rows == 0:
        total = tail_count
    else:
        # ~4 MiB per input tile: per-step pipeline overhead (~0.35 us) is a few
        # percent of the HBM stream on every generation.
        tile_bytes_target = 4 << 20
        max_block_rows = max(sub, (tile_bytes_target // (lane * itemsize)) // sub * sub)
        if rows <= max_block_rows:
            block_rows = rows  # one block covering the full dim (always legal)
        else:
            block_rows = max_block_rows
        nblocks = pl.cdiv(rows, block_rows)
        mask_tail = (rows % block_rows) != 0

        # No jnp.concatenate pad path anymore. The prefix slice below is only
        # materialized when n is not a multiple of 128 (otherwise copy-free).
        y2 = (y_flat[:n_main] if tail else y_flat).reshape(rows, lane)
        yhat2 = (yhat_flat[:n_main] if tail else yhat_flat).reshape(rows, lane)

        tile_bytes = block_rows * lane * itemsize
        # 2 inputs x 2 pipeline buffers (+ tiny per-lane acc); margin included,
        # well under every generation's physical VMEM (64 MiB on v7x).
        vmem_limit = int(min(48 << 20, max(16 << 20, 6 * tile_bytes)))

        # TODO(synk): v7x-only win: add a leading size-2 "parallel" grid axis
        # with per-core (1,1) partial counts to stream on both TensorCores.
        count = pl.pallas_call(
            _make_count_kernel(rows, block_rows, lane, mask_tail),
            out_shape=jax.ShapeDtypeStruct((1, 1), jnp.int32),
            grid_spec=pltpu.PrefetchScalarGridSpec(
                num_scalar_prefetch=0,
                grid=(nblocks,),
                in_specs=[
                    pl.BlockSpec((block_rows, lane), lambda i: (i, 0)),
                    pl.BlockSpec((block_rows, lane), lambda i: (i, 0)),
                ],
                out_specs=pl.BlockSpec(memory_space=pltpu.SMEM),
                scratch_shapes=[pltpu.VMEM((1, lane), jnp.int32)],
            ),
            compiler_params=pltpu.CompilerParams(
                dimension_semantics=("arbitrary",),  # accumulator carried across grid
                vmem_limit_bytes=vmem_limit,
            ),
            cost_estimate=pl.CostEstimate(
                flops=2 * n,
                transcendentals=0,
                bytes_accessed=2 * n * itemsize + 4,
            ),
        )(y2, yhat2)
        total = count[0, 0] + tail_count

    # acc = match_count / y.shape[0]  (divide in plain JAX, outside the kernel)
    return total.astype(jnp.float32) / jnp.float32(batch)


if __name__ == "__main__":
    key = jax.random.PRNGKey(0)
    k1, k2 = jax.random.split(key)

    # Small NCHW-like inputs consistent with the module's generic forward.
    shape = (2, 4, 16, 16)
    # y: small integer-valued floats so exact equality is meaningful
    y = jax.random.randint(k1, shape, 0, 4).astype(jnp.float32)
    # yhat: equal to y on a random ~50% subset of positions, different elsewhere
    mask = jax.random.bernoulli(k2, 0.5, shape)
    yhat = jnp.where(mask, y, y + 1.0)

    acc = map_loss(y, yhat)
    acc = jax.block_until_ready(acc)

    # reference in plain JAX
    ref = jnp.sum(jnp.where(yhat == y, 1.0, 0.0)) / shape[0]
    assert jnp.allclose(acc, ref, rtol=1e-6, atol=1e-6), (acc, ref)

    print("KERNEL_OK")
</pallas_src>

<mosaic_0001>
module attributes {stable_mosaic.version = 11 : i64} {
  func.func @kernel(%arg0: i32, %arg1: memref<2x1024xf32, #tpu.memory_space<vmem>>, %arg2: memref<2x1024xf32, #tpu.memory_space<vmem>>, %arg3: memref<1x1xi32, #tpu.memory_space<smem>>, %arg4: memref<1x1024xi32, #tpu.memory_space<vmem>>) attributes {dimension_semantics = [#tpu.dimension_semantics<arbitrary>], iteration_bounds = array<i64: 1>, scalar_prefetch = 0 : i64, scratch_operands = 1 : i64, tpu.core_type = #tpu.core_type<tc>, window_params = [{transform_indices = @transform_0, window_bounds = array<i64: 2, 1024>}, {transform_indices = @transform_1, window_bounds = array<i64: 2, 1024>}, {transform_indices = @transform_2, window_bounds = array<i64: 1, 1>}]} {
    %c0_i32 = arith.constant 0 : i32
    %0 = arith.cmpi eq, %arg0, %c0_i32 : i32
    %1 = arith.extui %0 : i1 to i32
    %c0_i32_0 = arith.constant 0 : i32
    %2 = arith.cmpi ne, %1, %c0_i32_0 : i32
    scf.if %2 {
      %c0_i32_10 = arith.constant 0 : i32
      %15 = vector.broadcast %c0_i32_10 : i32 to vector<1x1024xi32>
      %c0_11 = arith.constant 0 : index
      %c0_12 = arith.constant 0 : index
      %16 = vector.load %arg4[%c0_11, %c0_12] : memref<1x1024xi32, #tpu.memory_space<vmem>>, vector<1x1024xi32>
      tpu.vector_store %arg4[%c0_11, %c0_12], %15 {strides = array<i32>} : memref<1x1024xi32, #tpu.memory_space<vmem>>, vector<1x1024xi32>,
    } else {
    }
    %c0 = arith.constant 0 : index
    %c0_1 = arith.constant 0 : index
    %3 = vector.load %arg2[%c0, %c0_1] : memref<2x1024xf32, #tpu.memory_space<vmem>>, vector<2x1024xf32>
    %c0_2 = arith.constant 0 : index
    %c0_3 = arith.constant 0 : index
    %4 = vector.load %arg1[%c0_2, %c0_3] : memref<2x1024xf32, #tpu.memory_space<vmem>>, vector<2x1024xf32>
    %5 = arith.cmpf oeq, %3, %4 : vector<2x1024xf32>
    %6 = arith.extui %5 : vector<2x1024xi1> to vector<2x1024xi32>
    %c0_4 = arith.constant 0 : index
    %c0_5 = arith.constant 0 : index
    %7 = vector.load %arg4[%c0_4, %c0_5] : memref<1x1024xi32, #tpu.memory_space<vmem>>, vector<1x1024xi32>
    %cst = arith.constant dense<0> : vector<1024xi32>
    %8 = vector.multi_reduction <add>, %6, %cst [0] : vector<2x1024xi32> to vector<1024xi32>
    %9 = vector.shape_cast %8 : vector<1024xi32> to vector<1x1024xi32>
    %10 = arith.addi %7, %9 : vector<1x1024xi32>
    %c0_6 = arith.constant 0 : index
    %c0_7 = arith.constant 0 : index
    %11 = vector.load %arg4[%c0_6, %c0_7] : memref<1x1024xi32, #tpu.memory_space<vmem>>, vector<1x1024xi32>
    tpu.vector_store %arg4[%c0_6, %c0_7], %10 {strides = array<i32>} : memref<1x1024xi32, #tpu.memory_space<vmem>>, vector<1x1024xi32>,
    %c0_i32_8 = arith.constant 0 : i32
    %12 = arith.cmpi eq, %arg0, %c0_i32_8 : i32
    %13 = arith.extui %12 : i1 to i32
    %c0_i32_9 = arith.constant 0 : i32
    %14 = arith.cmpi ne, %13, %c0_i32_9 : i32
    scf.if %14 {
      %c0_10 = arith.constant 0 : index
      %c0_11 = arith.constant 0 : index
      %15 = vector.load %arg4[%c0_10, %c0_11] : memref<1x1024xi32, #tpu.memory_space<vmem>>, vector<1x1024xi32>
      %16 = vector.shape_cast %15 : vector<1x1024xi32> to vector<1x1x1024xi32>
      %cst_12 = arith.constant dense<0> : vector<1xi32>
      %17 = vector.multi_reduction <add>, %16, %cst_12 [1, 2] : vector<1x1x1024xi32> to vector<1xi32>
      %18 = vector.shape_cast %17 : vector<1xi32> to vector<1x1x1xi32>
      %19 = vector.extract %18[0, 0, 0] : i32 from vector<1x1x1xi32>
      %c0_13 = arith.constant 0 : index
      %c0_14 = arith.constant 0 : index
      %20 = memref.load %arg3[%c0_13, %c0_14] : memref<1x1xi32, #tpu.memory_space<smem>>
      memref.store %19, %arg3[%c0_13, %c0_14] : memref<1x1xi32, #tpu.memory_space<smem>>
    } else {
    }
    return
  }
  func.func @transform_0(%arg0: i32) -> (i32, i32) {
    %c0_i32 = arith.constant 0 : i32
    %c0_i32_0 = arith.constant 0 : i32
    return %arg0, %c0_i32 : i32, i32
  }
  func.func @transform_1(%arg0: i32) -> (i32, i32) {
    %c0_i32 = arith.constant 0 : i32
    %c0_i32_0 = arith.constant 0 : i32
    return %arg0, %c0_i32 : i32, i32
  }
  func.func @transform_2(%arg0: i32) -> (i32, i32) {
    %c0_i32 = arith.constant 0 : i32
    %c0_i32_0 = arith.constant 0 : i32
    %c0_i32_1 = arith.constant 0 : i32
    return %c0_i32, %c0_i32_0 : i32, i32
  }
}

</mosaic_0001>

<llo_original>
// kernel: tpu_custom_call.1
$region0: #{tpu_custom_call.1}
  #allocation0 [shape = 'u32[]', space=smem, size = 0x4, offset = 0x4, fixed_abs, tag = 'smem constant byte address 0x4 - core index']
  #allocation1 [shape = 'u32[144,128]{1,0:T(1,128)}', space=vmem, size = 0x12000, scoped, tag = 'internal scratch']
  #allocation2 [shape = 's32[1,1024]{1,0:T(1,128)}', space=vmem, size = 0x1000, scoped, tag = 'scratch operand']
  %s0 = inlined_call_operand.hbm [shape: f32[2,1024], index: 0, kind: input, shape index: {}]
  %s1 = inlined_call_operand.hbm [shape: f32[2,1024], index: 1, kind: input, shape index: {}]
  %s2 = inlined_call_operand.hbm [shape: s32[1,1], index: 2, kind: output, shape index: {}]
  %s3 = sld [smem:[#allocation0]]
  $region34: #{tpu_custom_call.1} parent=0
    _
  %s5 = ssub.s32 1, %s3
  %s6 = scalar_select 0, %s5, %s3
  $region1: #{tpu_custom_call.1} parent=0
    #allocation3 [shape = 'u8[8192]{0}', space=vmem, size = 0x2000, scoped, tag = 'input window, operand 0, single buffered']
    #allocation4 [shape = 's32[1]{0}', space=sflag, size = 0x4, scoped, tag = 'scoped memory for tpu_custom_call.1']
    #allocation5 [shape = 's32[1]{0}', space=sflag, size = 0x4, scoped, tag = 'scoped memory for tpu_custom_call.1']
    #allocation6 [shape = 'u8[8192]{0}', space=vmem, size = 0x2000, scoped, tag = 'input window, operand 1, single buffered']
    #allocation7 [shape = 's32[1]{0}', space=sflag, size = 0x4, scoped, tag = 'scoped memory for tpu_custom_call.1']
    #allocation8 [shape = 'u8[512]{0}', space=smem, size = 0x200, scoped, tag = 'output window, operand 0, single buffered']
    %7 = vsyncpa [#allocation4], 0
    %8 = vsyncpa [#allocation7], 0
    %9 = vsyncpa [#allocation5], 0
    // Predicated region
    $region2: #{tpu_custom_call.1} parent=1 // pred_check
      _
    $region3: #{tpu_custom_call.1} parent=1 // pred_check_branch
      %11 = sbr.rel (0) target = $region5
    $region4: #{tpu_custom_call.1} parent=1 // pred_region
      %s13 = ssub.s32 256, 256
      %14 = vsyncadd [#allocation4], %s13
      %s16 = sshll.u32 [#allocation3], 4
      %s17 = int_to_ptr.vmem [resolvable:$true] %s16
      %19 = dma.hbm_to_vmem [thread:$0]  %s0, 256, %s17, [#allocation4]
    $region5: #{tpu_custom_call.1} parent=1 // pred_fallthru
      _
    // Predicated region
    $region6: #{tpu_custom_call.1} parent=1 // pred_check
      _
    $region7: #{tpu_custom_call.1} parent=1 // pred_check_branch
      %21 = sbr.rel (0) target = $region9
    $region8: #{tpu_custom_call.1} parent=1 // pred_region
      %s23 = ssub.s32 256, 256
      %24 = vsyncadd [#allocation7], %s23
      %s26 = sshll.u32 [#allocation6], 4
      %s27 = int_to_ptr.vmem [resolvable:$true] %s26
      %29 = dma.hbm_to_vmem [thread:$0]  %s1, 256, %s27, [#allocation7]
    $region9: #{tpu_custom_call.1} parent=1 // pred_fallthru
      _
    // Predicated region
    $region10: #{tpu_custom_call.1} parent=1 // pred_check
      _
    $region11: #{tpu_custom_call.1} parent=1 // pred_check_branch
      %31 = sbr.rel (0) target = $region13
    $region12: #{tpu_custom_call.1} parent=1 // pred_region
      %32 = dma.done [#allocation4], 256
    $region13: #{tpu_custom_call.1} parent=1 // pred_fallthru
      _
    // Predicated region
    $region14: #{tpu_custom_call.1} parent=1 // pred_check
      _
    $region15: #{tpu_custom_call.1} parent=1 // pred_check_branch
      %34 = sbr.rel (0) target = $region17
    $region16: #{tpu_custom_call.1} parent=1 // pred_region
      %35 = dma.done [#allocation7], 256
    $region17: #{tpu_custom_call.1} parent=1 // pred_fallthru
      _
    %p36 = scmp.eq.s32.totalorder 0, 0
    // Predicated region
    $region18: #{tpu_custom_call.1} parent=1 // pred_check
      %p37 = pneg %p36
    $region19: #{tpu_custom_call.1} parent=1 // pred_check_branch
      %39 = sbr.rel (%p37) target = $region21
    $region20: #{tpu_custom_call.1} parent=1 // pred_region
      %40 = vst [vmem:[#allocation2] sm:$0xff] 0
    $region21: #{tpu_custom_call.1} parent=1 // pred_fallthru
      _
    %v41 = vld [vmem:[#allocation6] sm:$0xff]
    %v42 = vld [vmem:[#allocation6 + $0x8] sm:$0xff]
    %v43 = vld [vmem:[#allocation3] sm:$0xff]
    %v44 = vld [vmem:[#allocation3 + $0x8] sm:$0xff]
    %vm45 = vcmp.eq.f32.partialorder %v41, %v43
    %vm46 = vcmp.eq.f32.partialorder %v42, %v44
    %v47 = vsel %vm45, 1, 0
    %v48 = vsel %vm46, 1, 0
    %v49 = vld [vmem:[#allocation2] sm:$0xff]
    %v50 = vcombine.high %v47, %v47
    %v52 = vunpack.c.l.s4 1983009808
    %v53 = vunpack.c.0.s8 %v52
    %v54 = vlaneseq
    %v55 = vshrl.u32 %v54, 7
    %v56 = vsub.s32 %v53, %v55
    %v57 = vrot.slane %v47, %v56
    %v59 = vunpack.c.l.s4 1983009808
    %v60 = vunpack.c.0.s8 %v59
    %v61 = vlaneseq
    %v62 = vshrl.u32 %v61, 7
    %v63 = vsub.s32 %v60, %v62
    %v64 = vrot.slane %v50, %v63
    %v65 = vcombine.high %v57, %v57
    %v66 = vcombine.high %v64, %v64
    %v67 = vcombine.high %v48, %v48
    %v69 = vunpack.c.l.s4 1983009808
    %v70 = vunpack.c.0.s8 %v69
    %v71 = vlaneseq
    %v72 = vshrl.u32 %v71, 7
    %v73 = vsub.s32 %v70, %v72
    %v74 = vrot.slane %v48, %v73
    %v76 = vunpack.c.l.s4 1983009808
    %v77 = vunpack.c.0.s8 %v76
    %v78 = vlaneseq
    %v79 = vshrl.u32 %v78, 7
    %v80 = vsub.s32 %v77, %v79
    %v81 = vrot.slane %v67, %v80
    %v82 = vcombine.high %v74, %v74
    %v83 = vcombine.high %v81, %v81
    %vm84 = vcmask 1041408
    %v85 = vsel %vm84, %v57, 0
    %v86 = vrot.slane %v85, 4
    %v87 = vadd.s32 %v85, %v86
    %v88 = vrot.slane %v87, 2
    %v89 = vadd.s32 %v87, %v88
    %v90 = vrot.slane %v89, 1
    %v91 = vadd.s32 %v89, %v90
    %v92 = vsel %vm84, %v65, 0
    %v93 = vrot.slane %v92, 4
    %v94 = vadd.s32 %v92, %v93
    %v95 = vrot.slane %v94, 2
    %v96 = vadd.s32 %v94, %v95
    %v97 = vrot.slane %v96, 1
    %v98 = vadd.s32 %v96, %v97
    %v99 = vsel %vm84, %v64, 0
    %v100 = vrot.slane %v99, 4
    %v101 = vadd.s32 %v99, %v100
    %v102 = vrot.slane %v101, 2
    %v103 = vadd.s32 %v101, %v102
    %v104 = vrot.slane %v103, 1
    %v105 = vadd.s32 %v103, %v104
    %v106 = vsel %vm84, %v66, 0
    %v107 = vrot.slane %v106, 4
    %v108 = vadd.s32 %v106, %v107
    %v109 = vrot.slane %v108, 2
    %v110 = vadd.s32 %v108, %v109
    %v111 = vrot.slane %v110, 1
    %v112 = vadd.s32 %v110, %v111
    %v113 = vsel %vm84, %v74, 0
    %v114 = vrot.slane %v113, 4
    %v115 = vadd.s32 %v113, %v114
    %v116 = vrot.slane %v115, 2
    %v117 = vadd.s32 %v115, %v116
    %v118 = vrot.slane %v117, 1
    %v119 = vadd.s32 %v117, %v118
    %v120 = vsel %vm84, %v82, 0
    %v121 = vrot.slane %v120, 4
    %v122 = vadd.s32 %v120, %v121
    %v123 = vrot.slane %v122, 2
    %v124 = vadd.s32 %v122, %v123
    %v125 = vrot.slane %v124, 1
    %v126 = vadd.s32 %v124, %v125
    %v127 = vsel %vm84, %v81, 0
    %v128 = vrot.slane %v127, 4
    %v129 = vadd.s32 %v127, %v128
    %v130 = vrot.slane %v129, 2
    %v131 = vadd.s32 %v129, %v130
    %v132 = vrot.slane %v131, 1
    %v133 = vadd.s32 %v131, %v132
    %v134 = vsel %vm84, %v83, 0
    %v135 = vrot.slane %v134, 4
    %v136 = vadd.s32 %v134, %v135
    %v137 = vrot.slane %v136, 2
    %v138 = vadd.s32 %v136, %v137
    %v139 = vrot.slane %v138, 1
    %v140 = vadd.s32 %v138, %v139
    %v141 = vcombine.low %v91, %v98
    %v142 = vcombine.low %v105, %v112
    %v143 = vcombine.low %v119, %v126
    %v144 = vcombine.low %v133, %v140
    %v146 = vunpack.c.l.s4 1966171168
    %v147 = vunpack.c.0.s8 %v146
    %v148 = vlaneseq
    %v149 = vshrl.u32 %v148, 7
    %v150 = vsub.s32 %v147, %v149
    %v151 = vrot.slane %v141, %v150
    %v153 = vunpack.c.l.s4 1966171168
    %v154 = vunpack.c.0.s8 %v153
    %v155 = vlaneseq
    %v156 = vshrl.u32 %v155, 7
    %v157 = vsub.s32 %v154, %v156
    %v158 = vrot.slane %v142, %v157
    %v160 = vunpack.c.l.s4 1966171168
    %v161 = vunpack.c.0.s8 %v160
    %v162 = vlaneseq
    %v163 = vshrl.u32 %v162, 7
    %v164 = vsub.s32 %v161, %v163
    %v165 = vrot.slane %v143, %v164
    %v167 = vunpack.c.l.s4 1966171168
    %v168 = vunpack.c.0.s8 %v167
    %v169 = vlaneseq
    %v170 = vshrl.u32 %v169, 7
    %v171 = vsub.s32 %v168, %v170
    %v172 = vrot.slane %v144, %v171
    %v173 = vcombine.low %v151, %v158
    %v174 = vcombine.low %v165, %v172
    %v176 = vunpack.c.l.s4 1966171168
    %v177 = vunpack.c.0.s8 %v176
    %v178 = vlaneseq
    %v179 = vshrl.u32 %v178, 7
    %v180 = vsub.s32 %v177, %v179
    %v181 = vrot.slane %v173, %v180
    %v183 = vunpack.c.l.s4 1966171168
    %v184 = vunpack.c.0.s8 %v183
    %v185 = vlaneseq
    %v186 = vshrl.u32 %v185, 7
    %v187 = vsub.s32 %v184, %v186
    %v188 = vrot.slane %v174, %v187
    %v189 = vcombine.low %v181, %v188
    %v190 = vadd.s32 %v49, %v189
    %191 = vst [vmem:[#allocation2] sm:$0xff] %v190
    // Predicated region
    $region22: #{tpu_custom_call.1} parent=1 // pred_check
      %p192 = pneg %p36
    $region23: #{tpu_custom_call.1} parent=1 // pred_check_branch
      %194 = sbr.rel (%p192) target = $region25
    $region24: #{tpu_custom_call.1} parent=1 // pred_region
      %v195 = vld [vmem:[#allocation2] sm:$0xff]
      %v196 = vlaneseq
      %v197 = vshrl.u32 %v196, 7
      %v198 = vsub.s32 0, %v197
      %v199 = vrot.slane %v195, %v198
      %v200 = vlaneseq
      %v201 = vshrl.u32 %v200, 7
      %v202 = vsub.s32 1, %v201
      %v203 = vrot.slane %v195, %v202
      %v204 = vlaneseq
      %v205 = vshrl.u32 %v204, 7
      %v206 = vsub.s32 2, %v205
      %v207 = vrot.slane %v195, %v206
      %v208 = vlaneseq
      %v209 = vshrl.u32 %v208, 7
      %v210 = vsub.s32 3, %v209
      %v211 = vrot.slane %v195, %v210
      %v212 = vlaneseq
      %v213 = vshrl.u32 %v212, 7
      %v214 = vsub.s32 4, %v213
      %v215 = vrot.slane %v195, %v214
      %v216 = vlaneseq
      %v217 = vshrl.u32 %v216, 7
      %v218 = vsub.s32 5, %v217
      %v219 = vrot.slane %v195, %v218
      %v220 = vlaneseq
      %v221 = vshrl.u32 %v220, 7
      %v222 = vsub.s32 6, %v221
      %v223 = vrot.slane %v195, %v222
      %v224 = vlaneseq
      %v225 = vshrl.u32 %v224, 7
      %v226 = vsub.s32 7, %v225
      %v227 = vrot.slane %v195, %v226
      %vm228 = vcmask 1040384
      %v229 = vsel %vm228, %v199, 0
      %v230 = vsel %vm228, %v203, 0
      %v231 = vsel %vm228, %v207, 0
      %v232 = vsel %vm228, %v211, 0
      %v233 = vsel %vm228, %v215, 0
      %v234 = vadd.s32 %v229, %v233
      %v235 = vsel %vm228, %v219, 0
      %v236 = vadd.s32 %v230, %v235
      %v237 = vsel %vm228, %v223, 0
      %v238 = vadd.s32 %v231, %v237
      %v239 = vsel %vm228, %v227, 0
      %v240 = vadd.s32 %v232, %v239
      %v241 = vadd.s32 %v234, %v236
      %v242 = vadd.s32 %v238, %v240
      %v243 = vadd.s32 %v241, %v242
      %v244 = vand.u32 %v243, 65535
      %v245 = vshrl.u32 %v243, 16
      %v246 = vcvt.s32.f32 %v244
      %v247 = vcvt.s32.f32 %v245
      %248 = vadd.xlane.f32.xlu0 %v246
      %v249 = vpop.xlane.xlu0 %248
      %250 = vadd.xlane.f32.xlu0 %v247
      %v251 = vpop.xlane.xlu0 %250
      %v252 = vcvt.f32.s32 %v249
      %v253 = vcvt.f32.s32 %v251
      %v254 = vshll.u32 %v253, 16
      %v255 = vadd.s32 %v254, %v252
      %v256 = vrot.slane %v255, 4
      %v257 = vadd.s32 %v255, %v256
      %v258 = vrot.slane %v257, 2
      %v259 = vadd.s32 %v257, %v258
      %v260 = vrot.slane %v259, 1
      %v261 = vadd.s32 %v259, %v260
      %s262 = vtos %v261
      %s263 = scalar_lea.smem [#allocation8], 0
      %264 = sst [smem:[%s263]] %s262
    $region25: #{tpu_custom_call.1} parent=1 // pred_fallthru
      _
    // Predicated region
    $region26: #{tpu_custom_call.1} parent=1 // pred_check
      _
    $region27: #{tpu_custom_call.1} parent=1 // pred_check_branch
      %266 = sbr.rel (0) target = $region29
    $region28: #{tpu_custom_call.1} parent=1 // pred_region
      %s268 = ssub.s32 16, 16
      %269 = vsyncadd [#allocation5], %s268
      %272 = dma.smem_to_hbm [#allocation8], 16, %s2, [#allocation5]
    $region29: #{tpu_custom_call.1} parent=1 // pred_fallthru
      _
    // Predicated region
    $region30: #{tpu_custom_call.1} parent=1 // pred_check
      _
    $region31: #{tpu_custom_call.1} parent=1 // pred_check_branch
      %274 = sbr.rel (0) target = $region33
    $region32: #{tpu_custom_call.1} parent=1 // pred_region
      %275 = dma.done [#allocation5], 16
    $region33: #{tpu_custom_call.1} parent=1 // pred_fallthru
      _
    %276 = sfence
    %277 = vsyncpa [#allocation4], 1
    %278 = vsyncpa [#allocation7], 1
    %279 = vsyncpa [#allocation5], 1

</llo_original>
